<compile_context>
chip_gen: v7x
topology: tpu7x:2x2x1
jax: 0.10.0
libtpu: 0.0.40
codegen_flags: <defaults>
</compile_context>

<pallas_src>
import functools

import jax
import jax.numpy as jnp
from jax.experimental import pallas as pl
from jax.experimental.pallas import tpu as pltpu

# ----------------------------- configuration -------------------------------
B = 8            # batch size
Z = 16           # z_dim
H = 32           # hidden width of every MLP
IMG_C, IMG_H, IMG_W = 1, 8, 8
IMG_D = IMG_C * IMG_H * IMG_W     # 64
ATTR_D = 16
EPS = 1e-8
Z_PRIOR_LOC = 0.0
Z_PRIOR_SCALE = 1.0

# output slab column layout (lane-dense, padded to 256 lanes)
_COL_LOGITS = 0
_COL_PROBS = IMG_D                       # 64
_COL_ALOC = 2 * IMG_D                    # 128
_COL_ASCALE = 2 * IMG_D + ATTR_D         # 144
_COL_ZLOC = 2 * IMG_D + 2 * ATTR_D       # 160
_COL_ZSCALE = _COL_ZLOC + Z              # 176
_SLAB_USED = _COL_ZSCALE + Z             # 192
SLAB_W = 256                             # pad to multiple of 128 lanes


# ------------------------------ fused kernel --------------------------------
def _relu(x):
    return jnp.maximum(x, 0.0)


def mvae_fused_kernel(x_img_ref, attrs_ref,
                      ie_w1_ref, ie_b1_ref, ie_wh_ref, ie_bh_ref,
                      ae_w1_ref, ae_b1_ref, ae_wh_ref, ae_bh_ref,
                      dec_w1_ref, dec_b1_ref,
                      id_w2_ref, id_b2_ref, ad_wh_ref, ad_bh_ref,
                      out_ref):
    """Entire MVAE forward (deterministic path) in one kernel invocation.

    Everything stays in vregs/VMEM: encoder hiddens, PoE fusion, decoder
    hiddens.  Output is a single lane-dense [B, 256] slab.
    """
    f32 = jnp.float32
    nb = x_img_ref.shape[0]

    # --- image encoder: x -> relu(x@W1+b1) -> merged (loc | logvar) head ---
    h_img = _relu(jnp.dot(x_img_ref[...], ie_w1_ref[...],
                          preferred_element_type=f32) + ie_b1_ref[...])
    head_img = jnp.dot(h_img, ie_wh_ref[...],
                       preferred_element_type=f32) + ie_bh_ref[...]
    img_loc = head_img[:, :Z]
    img_scale = jnp.exp(0.5 * head_img[:, Z:])

    # --- attrs encoder ---
    h_att = _relu(jnp.dot(attrs_ref[...], ae_w1_ref[...],
                          preferred_element_type=f32) + ae_b1_ref[...])
    head_att = jnp.dot(h_att, ae_wh_ref[...],
                       preferred_element_type=f32) + ae_bh_ref[...]
    att_loc = head_att[:, :Z]
    att_scale = jnp.exp(0.5 * head_att[:, Z:])

    # --- Product of Experts with the unit-Normal prior folded analytically ---
    prior_prec = 1.0 / (Z_PRIOR_SCALE * Z_PRIOR_SCALE + EPS)   # python const
    prec_img = 1.0 / (img_scale * img_scale + EPS)
    prec_att = 1.0 / (att_scale * att_scale + EPS)
    sum_prec = prior_prec + prec_img + prec_att
    fused_var = 1.0 / sum_prec
    z_loc = (Z_PRIOR_LOC * prior_prec
             + img_loc * prec_img + att_loc * prec_att) * fused_var
    z_scale = jnp.sqrt(fused_var)

    # TODO(synk): pyro.sample('latent', Normal(z_loc, z_scale)) — deterministic
    # path (sample_z=False) used instead: z = z_loc.
    z = z_loc

    # --- decoders: both first layers merged into one [Z, 2H] matmul on z ---
    h_dec = _relu(jnp.dot(z, dec_w1_ref[...],
                          preferred_element_type=f32) + dec_b1_ref[...])
    h_img_dec = h_dec[:, :H]
    h_att_dec = h_dec[:, H:]

    # image decoder head -> Bernoulli logits / probs
    logits = jnp.dot(h_img_dec, id_w2_ref[...],
                     preferred_element_type=f32) + id_b2_ref[...]
    probs = jax.nn.sigmoid(logits)

    # attrs decoder merged (loc | logvar) head -> Normal (loc, scale)
    att_head = jnp.dot(h_att_dec, ad_wh_ref[...],
                       preferred_element_type=f32) + ad_bh_ref[...]
    att_dec_loc = att_head[:, :ATTR_D]
    att_dec_scale = jnp.exp(0.5 * att_head[:, ATTR_D:])

    # --- single lane-dense output slab (unmasked full-width store) ---
    pad = jnp.zeros((nb, SLAB_W - _SLAB_USED), f32)
    out_ref[...] = jnp.concatenate(
        [logits, probs, att_dec_loc, att_dec_scale, z_loc, z_scale, pad],
        axis=-1)


# ------------------------------ pallas wrapper ------------------------------
def mvae_fused_call(fp, x_img, attrs):
    """One pallas_call, no grid, full arrays resident in VMEM."""
    vmem = pl.BlockSpec(memory_space=pltpu.MemorySpace.VMEM)
    nb = x_img.shape[0]
    return pl.pallas_call(
        mvae_fused_kernel,
        out_shape=jax.ShapeDtypeStruct((nb, SLAB_W), jnp.float32),
        in_specs=[vmem] * 16,
        out_specs=vmem,
    )(x_img, attrs,
      fp["img_enc_w1"], fp["img_enc_b1"], fp["img_enc_wh"], fp["img_enc_bh"],
      fp["att_enc_w1"], fp["att_enc_b1"], fp["att_enc_wh"], fp["att_enc_bh"],
      fp["dec_w1"], fp["dec_b1"],
      fp["img_dec_w2"], fp["img_dec_b2"], fp["att_dec_wh"], fp["att_dec_bh"])


# ------------------------------ parameter setup -----------------------------
def _init_linear(key, fan_in, fan_out):
    kw, kb = jax.random.split(key)
    scale = 1.0 / jnp.sqrt(jnp.float32(fan_in))
    w = jax.random.uniform(kw, (fan_in, fan_out), jnp.float32, -scale, scale)
    b = jax.random.uniform(kb, (1, fan_out), jnp.float32, -scale, scale)
    return w, b


def init_params(key):
    """Raw per-module weights (matching the PyTorch module structure)."""
    ks = jax.random.split(key, 10)
    p = {}
    # image encoder: 64 -> 32 -> (16 loc, 16 logvar)
    p["img_enc_w1"], p["img_enc_b1"] = _init_linear(ks[0], IMG_D, H)
    p["img_enc_wl"], p["img_enc_bl"] = _init_linear(ks[1], H, Z)
    p["img_enc_ws"], p["img_enc_bs"] = _init_linear(ks[2], H, Z)
    # attrs encoder: 16 -> 32 -> (16 loc, 16 logvar)
    p["att_enc_w1"], p["att_enc_b1"] = _init_linear(ks[3], ATTR_D, H)
    p["att_enc_wl"], p["att_enc_bl"] = _init_linear(ks[4], H, Z)
    p["att_enc_ws"], p["att_enc_bs"] = _init_linear(ks[5], H, Z)
    # image decoder: 16 -> 32 -> 64 logits
    p["img_dec_w1"], p["img_dec_b1"] = _init_linear(ks[6], Z, H)
    p["img_dec_w2"], p["img_dec_b2"] = _init_linear(ks[7], H, IMG_D)
    # attrs decoder: 16 -> 32 -> (16 loc, 16 logvar)
    p["att_dec_w1"], p["att_dec_b1"] = _init_linear(ks[8], Z, H)
    p["att_dec_wl"], p["att_dec_bl"] = _init_linear(ks[9], H, ATTR_D)
    p["att_dec_ws"], p["att_dec_bs"] = _init_linear(
        jax.random.fold_in(key, 99), H, ATTR_D)
    return p


def prepare_fused_params(p):
    """Merge loc/logvar heads and the two decoder first layers (done once)."""
    fp = {
        "img_enc_w1": p["img_enc_w1"], "img_enc_b1": p["img_enc_b1"],
        "img_enc_wh": jnp.concatenate([p["img_enc_wl"], p["img_enc_ws"]], 1),
        "img_enc_bh": jnp.concatenate([p["img_enc_bl"], p["img_enc_bs"]], 1),
        "att_enc_w1": p["att_enc_w1"], "att_enc_b1": p["att_enc_b1"],
        "att_enc_wh": jnp.concatenate([p["att_enc_wl"], p["att_enc_ws"]], 1),
        "att_enc_bh": jnp.concatenate([p["att_enc_bl"], p["att_enc_bs"]], 1),
        "dec_w1": jnp.concatenate([p["img_dec_w1"], p["att_dec_w1"]], 1),
        "dec_b1": jnp.concatenate([p["img_dec_b1"], p["att_dec_b1"]], 1),
        "img_dec_w2": p["img_dec_w2"], "img_dec_b2": p["img_dec_b2"],
        "att_dec_wh": jnp.concatenate([p["att_dec_wl"], p["att_dec_ws"]], 1),
        "att_dec_bh": jnp.concatenate([p["att_dec_bl"], p["att_dec_bs"]], 1),
    }
    return fp


# ------------------------------ MVAE forward --------------------------------
@functools.partial(jax.jit, static_argnames=("batch_size",))
def mvae_forward(fused_params, image_nchw, attrs, batch_size=B):
    # glue: flatten NCHW image (layout: [batch, features] inside the kernel)
    x_img = image_nchw.reshape(batch_size, IMG_D)
    slab = mvae_fused_call(fused_params, x_img, attrs)

    img_logits = slab[:, _COL_LOGITS:_COL_LOGITS + IMG_D]
    img_probs = slab[:, _COL_PROBS:_COL_PROBS + IMG_D]
    att_dec_loc = slab[:, _COL_ALOC:_COL_ALOC + ATTR_D]
    att_dec_scale = slab[:, _COL_ASCALE:_COL_ASCALE + ATTR_D]
    z_loc = slab[:, _COL_ZLOC:_COL_ZLOC + Z]
    z_scale = slab[:, _COL_ZSCALE:_COL_ZSCALE + Z]

    # TODO(synk): pyro.sample('obs_*', dist) has no deterministic Pallas
    # equivalent; return distribution means as outputs.
    outputs = {"image": img_probs, "attrs": att_dec_loc}
    dist_params = {"image": img_logits, "attrs": (att_dec_loc, att_dec_scale)}
    return outputs, dist_params, (z_loc, z_scale)


# ------------------------------ pure-JAX reference ---------------------------
def mvae_forward_ref(p, image_nchw, attrs):
    x_img = image_nchw.reshape(B, IMG_D)

    def enc(x, w1, b1, wl, bl, ws, bs):
        h = jnp.maximum(x @ w1 + b1, 0.0)
        return h @ wl + bl, jnp.exp(0.5 * (h @ ws + bs))

    il, isc = enc(x_img, p["img_enc_w1"], p["img_enc_b1"], p["img_enc_wl"],
                  p["img_enc_bl"], p["img_enc_ws"], p["img_enc_bs"])
    al, asc = enc(attrs, p["att_enc_w1"], p["att_enc_b1"], p["att_enc_wl"],
                  p["att_enc_bl"], p["att_enc_ws"], p["att_enc_bs"])
    loc = jnp.stack([jnp.full((B, Z), Z_PRIOR_LOC), il, al])
    scale = jnp.stack([jnp.full((B, Z), Z_PRIOR_SCALE), isc, asc])
    prec = 1.0 / (scale * scale + EPS)
    fused_var = 1.0 / jnp.sum(prec, axis=0)
    z_loc = jnp.sum(loc * prec, axis=0) * fused_var
    z_scale = jnp.sqrt(fused_var)
    z = z_loc
    h = jnp.maximum(z @ p["img_dec_w1"] + p["img_dec_b1"], 0.0)
    logits = h @ p["img_dec_w2"] + p["img_dec_b2"]
    h2 = jnp.maximum(z @ p["att_dec_w1"] + p["att_dec_b1"], 0.0)
    dloc = h2 @ p["att_dec_wl"] + p["att_dec_bl"]
    dscale = jnp.exp(0.5 * (h2 @ p["att_dec_ws"] + p["att_dec_bs"]))
    return (jax.nn.sigmoid(logits), logits, dloc, dscale, z_loc, z_scale)


# ------------------------------------ main -----------------------------------
if __name__ == "__main__":
    key = jax.random.PRNGKey(0)
    kp, ki, ka = jax.random.split(key, 3)
    params = init_params(kp)
    fused_params = prepare_fused_params(params)
    image = jax.random.uniform(ki, (B, IMG_C, IMG_H, IMG_W), jnp.float32)
    attrs = jax.random.normal(ka, (B, ATTR_D), jnp.float32)

    outputs, dist_params, (z_loc, z_scale) = mvae_forward(
        fused_params, image, attrs)
    jax.block_until_ready((outputs, dist_params, z_loc, z_scale))

    probs_r, logits_r, dloc_r, dscale_r, zl_r, zs_r = mvae_forward_ref(
        params, image, attrs)
    assert jnp.allclose(z_loc, zl_r, atol=1e-5, rtol=1e-5)
    assert jnp.allclose(z_scale, zs_r, atol=1e-5, rtol=1e-5)
    assert jnp.allclose(outputs["image"], probs_r, atol=1e-5, rtol=1e-5)
    assert jnp.allclose(dist_params["image"], logits_r, atol=1e-5, rtol=1e-5)
    assert jnp.allclose(dist_params["attrs"][0], dloc_r, atol=1e-5, rtol=1e-5)
    assert jnp.allclose(dist_params["attrs"][1], dscale_r, atol=1e-5, rtol=1e-5)

    print("KERNEL_OK")
</pallas_src>

<mosaic_0001>
module attributes {stable_mosaic.version = 11 : i64} {
  func.func @mvae_fused_kernel(%arg0: memref<8x64xf32, #tpu.memory_space<vmem>>, %arg1: memref<8x16xf32, #tpu.memory_space<vmem>>, %arg2: memref<64x32xf32, #tpu.memory_space<vmem>>, %arg3: memref<1x32xf32, #tpu.memory_space<vmem>>, %arg4: memref<32x32xf32, #tpu.memory_space<vmem>>, %arg5: memref<1x32xf32, #tpu.memory_space<vmem>>, %arg6: memref<16x32xf32, #tpu.memory_space<vmem>>, %arg7: memref<1x32xf32, #tpu.memory_space<vmem>>, %arg8: memref<32x32xf32, #tpu.memory_space<vmem>>, %arg9: memref<1x32xf32, #tpu.memory_space<vmem>>, %arg10: memref<16x64xf32, #tpu.memory_space<vmem>>, %arg11: memref<1x64xf32, #tpu.memory_space<vmem>>, %arg12: memref<32x64xf32, #tpu.memory_space<vmem>>, %arg13: memref<1x64xf32, #tpu.memory_space<vmem>>, %arg14: memref<32x32xf32, #tpu.memory_space<vmem>>, %arg15: memref<1x32xf32, #tpu.memory_space<vmem>>, %arg16: memref<8x256xf32, #tpu.memory_space<vmem>>) attributes {dimension_semantics = [], scalar_prefetch = 0 : i64, scratch_operands = 0 : i64, tpu.core_type = #tpu.core_type<tc>} {
    %c0 = arith.constant 0 : index
    %c0_0 = arith.constant 0 : index
    %0 = vector.load %arg0[%c0, %c0_0] : memref<8x64xf32, #tpu.memory_space<vmem>>, vector<8x64xf32>
    %c0_1 = arith.constant 0 : index
    %c0_2 = arith.constant 0 : index
    %1 = vector.load %arg2[%c0_1, %c0_2] : memref<64x32xf32, #tpu.memory_space<vmem>>, vector<64x32xf32>
    %cst = arith.constant dense<0.000000e+00> : vector<8x32xf32>
    %2 = tpu.matmul %0, %1, %cst {dimension_numbers = #tpu.dot_dimension_numbers<[1], [0], [0], [1], [0, 0, 1, 1], [], []>} : vector<8x64xf32>, vector<64x32xf32>, vector<8x32xf32> -> vector<8x32xf32>
    %c0_3 = arith.constant 0 : index
    %c0_4 = arith.constant 0 : index
    %3 = vector.load %arg3[%c0_3, %c0_4] : memref<1x32xf32, #tpu.memory_space<vmem>>, vector<1x32xf32>
    %4 = vector.broadcast %3 : vector<1x32xf32> to vector<8x32xf32>
    %5 = arith.addf %2, %4 : vector<8x32xf32>
    %cst_5 = arith.constant 0.000000e+00 : f32
    %6 = vector.broadcast %cst_5 : f32 to vector<8x32xf32>
    %7 = arith.maximumf %5, %6 : vector<8x32xf32>
    %c0_6 = arith.constant 0 : index
    %c0_7 = arith.constant 0 : index
    %8 = vector.load %arg4[%c0_6, %c0_7] : memref<32x32xf32, #tpu.memory_space<vmem>>, vector<32x32xf32>
    %cst_8 = arith.constant dense<0.000000e+00> : vector<8x32xf32>
    %9 = tpu.matmul %7, %8, %cst_8 {dimension_numbers = #tpu.dot_dimension_numbers<[1], [0], [0], [1], [0, 0, 1, 1], [], []>} : vector<8x32xf32>, vector<32x32xf32>, vector<8x32xf32> -> vector<8x32xf32>
    %c0_9 = arith.constant 0 : index
    %c0_10 = arith.constant 0 : index
    %10 = vector.load %arg5[%c0_9, %c0_10] : memref<1x32xf32, #tpu.memory_space<vmem>>, vector<1x32xf32>
    %11 = vector.broadcast %10 : vector<1x32xf32> to vector<8x32xf32>
    %12 = arith.addf %9, %11 : vector<8x32xf32>
    %13 = vector.extract_strided_slice %12 {offsets = [0, 0], sizes = [8, 16], strides = [1, 1]} : vector<8x32xf32> to vector<8x16xf32>
    %14 = vector.extract_strided_slice %12 {offsets = [0, 16], sizes = [8, 16], strides = [1, 1]} : vector<8x32xf32> to vector<8x16xf32>
    %cst_11 = arith.constant 5.000000e-01 : f32
    %15 = vector.broadcast %cst_11 : f32 to vector<8x16xf32>
    %16 = arith.mulf %15, %14 : vector<8x16xf32>
    %17 = math.exp %16 : vector<8x16xf32>
    %c0_12 = arith.constant 0 : index
    %c0_13 = arith.constant 0 : index
    %18 = vector.load %arg1[%c0_12, %c0_13] : memref<8x16xf32, #tpu.memory_space<vmem>>, vector<8x16xf32>
    %c0_14 = arith.constant 0 : index
    %c0_15 = arith.constant 0 : index
    %19 = vector.load %arg6[%c0_14, %c0_15] : memref<16x32xf32, #tpu.memory_space<vmem>>, vector<16x32xf32>
    %cst_16 = arith.constant dense<0.000000e+00> : vector<8x32xf32>
    %20 = tpu.matmul %18, %19, %cst_16 {dimension_numbers = #tpu.dot_dimension_numbers<[1], [0], [0], [1], [0, 0, 1, 1], [], []>} : vector<8x16xf32>, vector<16x32xf32>, vector<8x32xf32> -> vector<8x32xf32>
    %c0_17 = arith.constant 0 : index
    %c0_18 = arith.constant 0 : index
    %21 = vector.load %arg7[%c0_17, %c0_18] : memref<1x32xf32, #tpu.memory_space<vmem>>, vector<1x32xf32>
    %22 = vector.broadcast %21 : vector<1x32xf32> to vector<8x32xf32>
    %23 = arith.addf %20, %22 : vector<8x32xf32>
    %cst_19 = arith.constant 0.000000e+00 : f32
    %24 = vector.broadcast %cst_19 : f32 to vector<8x32xf32>
    %25 = arith.maximumf %23, %24 : vector<8x32xf32>
    %c0_20 = arith.constant 0 : index
    %c0_21 = arith.constant 0 : index
    %26 = vector.load %arg8[%c0_20, %c0_21] : memref<32x32xf32, #tpu.memory_space<vmem>>, vector<32x32xf32>
    %cst_22 = arith.constant dense<0.000000e+00> : vector<8x32xf32>
    %27 = tpu.matmul %25, %26, %cst_22 {dimension_numbers = #tpu.dot_dimension_numbers<[1], [0], [0], [1], [0, 0, 1, 1], [], []>} : vector<8x32xf32>, vector<32x32xf32>, vector<8x32xf32> -> vector<8x32xf32>
    %c0_23 = arith.constant 0 : index
    %c0_24 = arith.constant 0 : index
    %28 = vector.load %arg9[%c0_23, %c0_24] : memref<1x32xf32, #tpu.memory_space<vmem>>, vector<1x32xf32>
    %29 = vector.broadcast %28 : vector<1x32xf32> to vector<8x32xf32>
    %30 = arith.addf %27, %29 : vector<8x32xf32>
    %31 = vector.extract_strided_slice %30 {offsets = [0, 0], sizes = [8, 16], strides = [1, 1]} : vector<8x32xf32> to vector<8x16xf32>
    %32 = vector.extract_strided_slice %30 {offsets = [0, 16], sizes = [8, 16], strides = [1, 1]} : vector<8x32xf32> to vector<8x16xf32>
    %cst_25 = arith.constant 5.000000e-01 : f32
    %33 = vector.broadcast %cst_25 : f32 to vector<8x16xf32>
    %34 = arith.mulf %33, %32 : vector<8x16xf32>
    %35 = math.exp %34 : vector<8x16xf32>
    %36 = arith.mulf %17, %17 : vector<8x16xf32>
    %cst_26 = arith.constant 9.99999993E-9 : f32
    %37 = vector.broadcast %cst_26 : f32 to vector<8x16xf32>
    %38 = arith.addf %36, %37 : vector<8x16xf32>
    %cst_27 = arith.constant 1.000000e+00 : f32
    %39 = vector.broadcast %cst_27 : f32 to vector<8x16xf32>
    %40 = arith.divf %39, %38 : vector<8x16xf32>
    %41 = arith.mulf %35, %35 : vector<8x16xf32>
    %cst_28 = arith.constant 9.99999993E-9 : f32
    %42 = vector.broadcast %cst_28 : f32 to vector<8x16xf32>
    %43 = arith.addf %41, %42 : vector<8x16xf32>
    %cst_29 = arith.constant 1.000000e+00 : f32
    %44 = vector.broadcast %cst_29 : f32 to vector<8x16xf32>
    %45 = arith.divf %44, %43 : vector<8x16xf32>
    %cst_30 = arith.constant 1.000000e+00 : f32
    %46 = vector.broadcast %cst_30 : f32 to vector<8x16xf32>
    %47 = arith.addf %46, %40 : vector<8x16xf32>
    %48 = arith.addf %47, %45 : vector<8x16xf32>
    %cst_31 = arith.constant 1.000000e+00 : f32
    %49 = vector.broadcast %cst_31 : f32 to vector<8x16xf32>
    %50 = arith.divf %49, %48 : vector<8x16xf32>
    %51 = arith.mulf %13, %40 : vector<8x16xf32>
    %cst_32 = arith.constant 0.000000e+00 : f32
    %52 = vector.broadcast %cst_32 : f32 to vector<8x16xf32>
    %53 = arith.addf %52, %51 : vector<8x16xf32>
    %54 = arith.mulf %31, %45 : vector<8x16xf32>
    %55 = arith.addf %53, %54 : vector<8x16xf32>
    %56 = arith.mulf %55, %50 : vector<8x16xf32>
    %57 = math.sqrt %50 : vector<8x16xf32>
    %c0_33 = arith.constant 0 : index
    %c0_34 = arith.constant 0 : index
    %58 = vector.load %arg10[%c0_33, %c0_34] : memref<16x64xf32, #tpu.memory_space<vmem>>, vector<16x64xf32>
    %cst_35 = arith.constant dense<0.000000e+00> : vector<8x64xf32>
    %59 = tpu.matmul %56, %58, %cst_35 {dimension_numbers = #tpu.dot_dimension_numbers<[1], [0], [0], [1], [0, 0, 1, 1], [], []>} : vector<8x16xf32>, vector<16x64xf32>, vector<8x64xf32> -> vector<8x64xf32>
    %c0_36 = arith.constant 0 : index
    %c0_37 = arith.constant 0 : index
    %60 = vector.load %arg11[%c0_36, %c0_37] : memref<1x64xf32, #tpu.memory_space<vmem>>, vector<1x64xf32>
    %61 = vector.broadcast %60 : vector<1x64xf32> to vector<8x64xf32>
    %62 = arith.addf %59, %61 : vector<8x64xf32>
    %cst_38 = arith.constant 0.000000e+00 : f32
    %63 = vector.broadcast %cst_38 : f32 to vector<8x64xf32>
    %64 = arith.maximumf %62, %63 : vector<8x64xf32>
    %65 = vector.extract_strided_slice %64 {offsets = [0, 0], sizes = [8, 32], strides = [1, 1]} : vector<8x64xf32> to vector<8x32xf32>
    %66 = vector.extract_strided_slice %64 {offsets = [0, 32], sizes = [8, 32], strides = [1, 1]} : vector<8x64xf32> to vector<8x32xf32>
    %c0_39 = arith.constant 0 : index
    %c0_40 = arith.constant 0 : index
    %67 = vector.load %arg12[%c0_39, %c0_40] : memref<32x64xf32, #tpu.memory_space<vmem>>, vector<32x64xf32>
    %cst_41 = arith.constant dense<0.000000e+00> : vector<8x64xf32>
    %68 = tpu.matmul %65, %67, %cst_41 {dimension_numbers = #tpu.dot_dimension_numbers<[1], [0], [0], [1], [0, 0, 1, 1], [], []>} : vector<8x32xf32>, vector<32x64xf32>, vector<8x64xf32> -> vector<8x64xf32>
    %c0_42 = arith.constant 0 : index
    %c0_43 = arith.constant 0 : index
    %69 = vector.load %arg13[%c0_42, %c0_43] : memref<1x64xf32, #tpu.memory_space<vmem>>, vector<1x64xf32>
    %70 = vector.broadcast %69 : vector<1x64xf32> to vector<8x64xf32>
    %71 = arith.addf %68, %70 : vector<8x64xf32>
    %72 = arith.negf %71 : vector<8x64xf32>
    %73 = math.exp %72 : vector<8x64xf32>
    %cst_44 = arith.constant 1.000000e+00 : f32
    %74 = vector.broadcast %cst_44 : f32 to vector<8x64xf32>
    %75 = arith.addf %74, %73 : vector<8x64xf32>
    %76 = arith.divf %74, %75 : vector<8x64xf32>
    %c0_45 = arith.constant 0 : index
    %c0_46 = arith.constant 0 : index
    %77 = vector.load %arg14[%c0_45, %c0_46] : memref<32x32xf32, #tpu.memory_space<vmem>>, vector<32x32xf32>
    %cst_47 = arith.constant dense<0.000000e+00> : vector<8x32xf32>
    %78 = tpu.matmul %66, %77, %cst_47 {dimension_numbers = #tpu.dot_dimension_numbers<[1], [0], [0], [1], [0, 0, 1, 1], [], []>} : vector<8x32xf32>, vector<32x32xf32>, vector<8x32xf32> -> vector<8x32xf32>
    %c0_48 = arith.constant 0 : index
    %c0_49 = arith.constant 0 : index
    %79 = vector.load %arg15[%c0_48, %c0_49] : memref<1x32xf32, #tpu.memory_space<vmem>>, vector<1x32xf32>
    %80 = vector.broadcast %79 : vector<1x32xf32> to vector<8x32xf32>
    %81 = arith.addf %78, %80 : vector<8x32xf32>
    %82 = vector.extract_strided_slice %81 {offsets = [0, 0], sizes = [8, 16], strides = [1, 1]} : vector<8x32xf32> to vector<8x16xf32>
    %83 = vector.extract_strided_slice %81 {offsets = [0, 16], sizes = [8, 16], strides = [1, 1]} : vector<8x32xf32> to vector<8x16xf32>
    %cst_50 = arith.constant 5.000000e-01 : f32
    %84 = vector.broadcast %cst_50 : f32 to vector<8x16xf32>
    %85 = arith.mulf %84, %83 : vector<8x16xf32>
    %86 = math.exp %85 : vector<8x16xf32>
    %cst_51 = arith.constant 0.000000e+00 : f32
    %87 = vector.broadcast %cst_51 : f32 to vector<8x64xf32>
    %88 = tpu.concatenate %71, %76, %82, %86, %56, %57, %87 in 1 : vector<8x64xf32>, vector<8x64xf32>, vector<8x16xf32>, vector<8x16xf32>, vector<8x16xf32>, vector<8x16xf32>, vector<8x64xf32> -> vector<8x256xf32>
    %c0_52 = arith.constant 0 : index
    %c0_53 = arith.constant 0 : index
    %89 = vector.load %arg16[%c0_52, %c0_53] : memref<8x256xf32, #tpu.memory_space<vmem>>, vector<8x256xf32>
    tpu.vector_store %arg16[%c0_52, %c0_53], %88 {strides = array<i32>} : memref<8x256xf32, #tpu.memory_space<vmem>>, vector<8x256xf32>,
    return
  }
}

</mosaic_0001>

<llo_original>
// kernel: mvae_forward.1
$region0: #{mvae_forward.1}
  #allocation0 [shape = 'u32[]', space=smem, size = 0x4, offset = 0x4, fixed_abs, tag = 'smem constant byte address 0x4 - core index']
  #allocation1 [shape = 'u32[144,128]{1,0:T(1,128)}', space=vmem, size = 0x12000, scoped, tag = 'internal scratch']
  %s0 = inlined_call_operand.vmem [shape: f32[8,64], index: 0, kind: input, shape index: {}]
  %s1 = inlined_call_operand.vmem [shape: f32[8,16], index: 1, kind: input, shape index: {}]
  %s2 = inlined_call_operand.vmem [shape: f32[64,32], index: 2, kind: input, shape index: {}]
  %s3 = inlined_call_operand.vmem [shape: f32[1,32], index: 3, kind: input, shape index: {}]
  %s4 = inlined_call_operand.vmem [shape: f32[32,32], index: 4, kind: input, shape index: {}]
  %s5 = inlined_call_operand.vmem [shape: f32[1,32], index: 5, kind: input, shape index: {}]
  %s6 = inlined_call_operand.vmem [shape: f32[16,32], index: 6, kind: input, shape index: {}]
  %s7 = inlined_call_operand.hbm [shape: f32[1,32], index: 7, kind: input, shape index: {}]
  %s8 = inlined_call_operand.vmem [shape: f32[32,32], index: 8, kind: input, shape index: {}]
  %s9 = inlined_call_operand.hbm [shape: f32[1,32], index: 9, kind: input, shape index: {}]
  %s10 = inlined_call_operand.vmem [shape: f32[16,64], index: 10, kind: input, shape index: {}]
  %s11 = inlined_call_operand.hbm [shape: f32[1,64], index: 11, kind: input, shape index: {}]
  %s12 = inlined_call_operand.vmem [shape: f32[32,64], index: 12, kind: input, shape index: {}]
  %s13 = inlined_call_operand.hbm [shape: f32[1,64], index: 13, kind: input, shape index: {}]
  %s14 = inlined_call_operand.vmem [shape: f32[32,32], index: 14, kind: input, shape index: {}]
  %s15 = inlined_call_operand.hbm [shape: f32[1,32], index: 15, kind: input, shape index: {}]
  %s16 = inlined_call_operand.vmem [shape: f32[8,256], index: 16, kind: output, shape index: {}]
  %s17 = sld [smem:[#allocation0]]
  $region94: #{mvae_forward.1} parent=0
    _
  %s19 = ssub.s32 1, %s17
  %s20 = scalar_select 0, %s19, %s17
  $region1: #{mvae_forward.1} parent=0
    #allocation2 [shape = 'u8[512]{0}', space=vmem, size = 0x400, scoped, tag = 'input window, operand 7, single buffered']
    #allocation3 [shape = 's32[1]{0}', space=sflag, size = 0x4, scoped, tag = 'scoped memory for mvae_forward.1']
    #allocation4 [shape = 'u8[512]{0}', space=vmem, size = 0x400, scoped, tag = 'input window, operand 9, single buffered']
    #allocation5 [shape = 's32[1]{0}', space=sflag, size = 0x4, scoped, tag = 'scoped memory for mvae_forward.1']
    #allocation6 [shape = 'u8[512]{0}', space=vmem, size = 0x400, scoped, tag = 'input window, operand 11, single buffered']
    #allocation7 [shape = 'u8[512]{0}', space=vmem, size = 0x400, scoped, tag = 'input window, operand 13, single buffered']
    #allocation8 [shape = 's32[1]{0}', space=sflag, size = 0x4, scoped, tag = 'scoped memory for mvae_forward.1']
    #allocation9 [shape = 'u8[512]{0}', space=vmem, size = 0x400, scoped, tag = 'input window, operand 15, single buffered']
    %21 = vsyncpa [#allocation3], 0
    %22 = vsyncpa [#allocation5], 0
    %23 = vsyncpa [#allocation8], 0
    // Predicated region
    $region2: #{mvae_forward.1} parent=1 // pred_check
      _
    $region3: #{mvae_forward.1} parent=1 // pred_check_branch
      %25 = sbr.rel (0) target = $region5
    $region4: #{mvae_forward.1} parent=1 // pred_region
      _
    $region5: #{mvae_forward.1} parent=1 // pred_fallthru
      _
    // Predicated region
    $region6: #{mvae_forward.1} parent=1 // pred_check
      _
    $region7: #{mvae_forward.1} parent=1 // pred_check_branch
      %27 = sbr.rel (0) target = $region9
    $region8: #{mvae_forward.1} parent=1 // pred_region
      _
    $region9: #{mvae_forward.1} parent=1 // pred_fallthru
      _
    // Predicated region
    $region10: #{mvae_forward.1} parent=1 // pred_check
      _
    $region11: #{mvae_forward.1} parent=1 // pred_check_branch
      %29 = sbr.rel (0) target = $region13
    $region12: #{mvae_forward.1} parent=1 // pred_region
      _
    $region13: #{mvae_forward.1} parent=1 // pred_fallthru
      _
    // Predicated region
    $region14: #{mvae_forward.1} parent=1 // pred_check
      _
    $region15: #{mvae_forward.1} parent=1 // pred_check_branch
      %31 = sbr.rel (0) target = $region17
    $region16: #{mvae_forward.1} parent=1 // pred_region
      _
    $region17: #{mvae_forward.1} parent=1 // pred_fallthru
      _
    // Predicated region
    $region18: #{mvae_forward.1} parent=1 // pred_check
      _
    $region19: #{mvae_forward.1} parent=1 // pred_check_branch
      %33 = sbr.rel (0) target = $region21
    $region20: #{mvae_forward.1} parent=1 // pred_region
      _
    $region21: #{mvae_forward.1} parent=1 // pred_fallthru
      _
    // Predicated region
    $region22: #{mvae_forward.1} parent=1 // pred_check
      _
    $region23: #{mvae_forward.1} parent=1 // pred_check_branch
      %35 = sbr.rel (0) target = $region25
    $region24: #{mvae_forward.1} parent=1 // pred_region
      _
    $region25: #{mvae_forward.1} parent=1 // pred_fallthru
      _
    // Predicated region
    $region26: #{mvae_forward.1} parent=1 // pred_check
      _
    $region27: #{mvae_forward.1} parent=1 // pred_check_branch
      %37 = sbr.rel (0) target = $region29
    $region28: #{mvae_forward.1} parent=1 // pred_region
      _
    $region29: #{mvae_forward.1} parent=1 // pred_fallthru
      _
    // Predicated region
    $region30: #{mvae_forward.1} parent=1 // pred_check
      _
    $region31: #{mvae_forward.1} parent=1 // pred_check_branch
      %39 = sbr.rel (0) target = $region33
    $region32: #{mvae_forward.1} parent=1 // pred_region
      %s41 = ssub.s32 16, 16
      %42 = vsyncadd [#allocation3], %s41
      %s44 = sshll.u32 [#allocation2], 4
      %s45 = int_to_ptr.vmem [resolvable:$true] %s44
      %47 = dma.hbm_to_vmem [thread:$0]  %s7, 16, %s45, [#allocation3]
    $region33: #{mvae_forward.1} parent=1 // pred_fallthru
      _
    // Predicated region
    $region34: #{mvae_forward.1} parent=1 // pred_check
      _
    $region35: #{mvae_forward.1} parent=1 // pred_check_branch
      %49 = sbr.rel (0) target = $region37
    $region36: #{mvae_forward.1} parent=1 // pred_region
      _
    $region37: #{mvae_forward.1} parent=1 // pred_fallthru
      _
    // Predicated region
    $region38: #{mvae_forward.1} parent=1 // pred_check
      _
    $region39: #{mvae_forward.1} parent=1 // pred_check_branch
      %51 = sbr.rel (0) target = $region41
    $region40: #{mvae_forward.1} parent=1 // pred_region
      %s53 = ssub.s32 16, 16
      %54 = vsyncadd [#allocation5], %s53
      %s56 = sshll.u32 [#allocation4], 4
      %s57 = int_to_ptr.vmem [resolvable:$true] %s56
      %59 = dma.hbm_to_vmem [thread:$0]  %s9, 16, %s57, [#allocation5]
    $region41: #{mvae_forward.1} parent=1 // pred_fallthru
      _
    // Predicated region
    $region42: #{mvae_forward.1} parent=1 // pred_check
      _
    $region43: #{mvae_forward.1} parent=1 // pred_check_branch
      %61 = sbr.rel (0) target = $region45
    $region44: #{mvae_forward.1} parent=1 // pred_region
      _
    $region45: #{mvae_forward.1} parent=1 // pred_fallthru
      _
    // Predicated region
    $region46: #{mvae_forward.1} parent=1 // pred_check
      _
    $region47: #{mvae_forward.1} parent=1 // pred_check_branch
      %63 = sbr.rel (0) target = $region49
    $region48: #{mvae_forward.1} parent=1 // pred_region
      %s65 = ssub.s32 16, 16
      %66 = vsyncadd [#allocation5], %s65
      %s68 = sshll.u32 [#allocation6], 4
      %s69 = int_to_ptr.vmem [resolvable:$true] %s68
      %71 = dma.hbm_to_vmem [thread:$0]  %s11, 16, %s69, [#allocation5]
    $region49: #{mvae_forward.1} parent=1 // pred_fallthru
      _
    // Predicated region
    $region50: #{mvae_forward.1} parent=1 // pred_check
      _
    $region51: #{mvae_forward.1} parent=1 // pred_check_branch
      %73 = sbr.rel (0) target = $region53
    $region52: #{mvae_forward.1} parent=1 // pred_region
      _
    $region53: #{mvae_forward.1} parent=1 // pred_fallthru
      _
    // Predicated region
    $region54: #{mvae_forward.1} parent=1 // pred_check
      _
    $region55: #{mvae_forward.1} parent=1 // pred_check_branch
      %75 = sbr.rel (0) target = $region57
    $region56: #{mvae_forward.1} parent=1 // pred_region
      %s77 = ssub.s32 16, 16
      %78 = vsyncadd [#allocation8], %s77
      %s80 = sshll.u32 [#allocation7], 4
      %s81 = int_to_ptr.vmem [resolvable:$true] %s80
      %83 = dma.hbm_to_vmem [thread:$0]  %s13, 16, %s81, [#allocation8]
    $region57: #{mvae_forward.1} parent=1 // pred_fallthru
      _
    // Predicated region
    $region58: #{mvae_forward.1} parent=1 // pred_check
      _
    $region59: #{mvae_forward.1} parent=1 // pred_check_branch
      %85 = sbr.rel (0) target = $region61
    $region60: #{mvae_forward.1} parent=1 // pred_region
      _
    $region61: #{mvae_forward.1} parent=1 // pred_fallthru
      _
    // Predicated region
    $region62: #{mvae_forward.1} parent=1 // pred_check
      _
    $region63: #{mvae_forward.1} parent=1 // pred_check_branch
      %87 = sbr.rel (0) target = $region65
    $region64: #{mvae_forward.1} parent=1 // pred_region
      %s89 = ssub.s32 16, 16
      %90 = vsyncadd [#allocation8], %s89
      %s92 = sshll.u32 [#allocation9], 4
      %s93 = int_to_ptr.vmem [resolvable:$true] %s92
      %95 = dma.hbm_to_vmem [thread:$0]  %s15, 16, %s93, [#allocation8]
    $region65: #{mvae_forward.1} parent=1 // pred_fallthru
      _
    // Predicated region
    $region66: #{mvae_forward.1} parent=1 // pred_check
      _
    $region67: #{mvae_forward.1} parent=1 // pred_check_branch
      %97 = sbr.rel (0) target = $region69
    $region68: #{mvae_forward.1} parent=1 // pred_region
      %98 = dma.done [#allocation3], 16
    $region69: #{mvae_forward.1} parent=1 // pred_fallthru
      _
    // Predicated region
    $region70: #{mvae_forward.1} parent=1 // pred_check
      _
    $region71: #{mvae_forward.1} parent=1 // pred_check_branch
      %100 = sbr.rel (0) target = $region73
    $region72: #{mvae_forward.1} parent=1 // pred_region
      %101 = dma.done [#allocation5], 16
    $region73: #{mvae_forward.1} parent=1 // pred_fallthru
      _
    // Predicated region
    $region74: #{mvae_forward.1} parent=1 // pred_check
      _
    $region75: #{mvae_forward.1} parent=1 // pred_check_branch
      %103 = sbr.rel (0) target = $region77
    $region76: #{mvae_forward.1} parent=1 // pred_region
      %104 = dma.done [#allocation5], 16
    $region77: #{mvae_forward.1} parent=1 // pred_fallthru
      _
    // Predicated region
    $region78: #{mvae_forward.1} parent=1 // pred_check
      _
    $region79: #{mvae_forward.1} parent=1 // pred_check_branch
      %106 = sbr.rel (0) target = $region81
    $region80: #{mvae_forward.1} parent=1 // pred_region
      %107 = dma.done [#allocation8], 16
    $region81: #{mvae_forward.1} parent=1 // pred_fallthru
      _
    // Predicated region
    $region82: #{mvae_forward.1} parent=1 // pred_check
      _
    $region83: #{mvae_forward.1} parent=1 // pred_check_branch
      %109 = sbr.rel (0) target = $region85
    $region84: #{mvae_forward.1} parent=1 // pred_region
      %110 = dma.done [#allocation8], 16
    $region85: #{mvae_forward.1} parent=1 // pred_fallthru
      _
    %v111 = vld [vmem:[%s0] sm:$0xff]
    %v112 = vld [vmem:[%s2] sm:$0xff]
    %v113 = vld [vmem:[%s2 + $0x8] sm:$0xff]
    %v114 = vld [vmem:[%s2 + $0x10] sm:$0xff]
    %v115 = vld [vmem:[%s2 + $0x18] sm:$0xff]
    %v116 = vld [vmem:[%s2 + $0x20] sm:$0xff]
    %v117 = vld [vmem:[%s2 + $0x28] sm:$0xff]
    %v118 = vld [vmem:[%s2 + $0x30] sm:$0xff]
    %v119 = vld [vmem:[%s2 + $0x38] sm:$0xff]
    %v120 = vld [vmem:[%s3] sm:$0x1]
    %v122 = vlaneseq
    %v123 = vshrl.u32 %v122, 7
    %v124 = vsub.s32 0, %v123
    %v125 = vrot.slane %v120, %v124
    %vm127 = vcmask 523264
    %v129 = vsel %vm127, %v111, 0
    %131 = vmatprep.subr.mxu0 0.0
    %132 = vmatpush1.msra.mxu0 %v112
    %133 = vmatprep.subr.mxu0 0.0
    %134 = vmatpush1.msra.mxu0 %v113
    %135 = vmatprep.subr.mxu0 0.0
    %136 = vmatpush1.msra.mxu0 %v114
    %137 = vmatprep.subr.mxu0 0.0
    %138 = vmatpush1.msra.mxu0 %v115
    %139 = vmatprep.subr.mxu0 0.0
    %140 = vmatpush1.msra.mxu0 %v116
    %141 = vmatprep.subr.mxu0 0.0
    %142 = vmatpush1.msra.mxu0 %v117
    %143 = vmatprep.subr.mxu0 0.0
    %144 = vmatpush1.msra.mxu0 %v118
    %145 = vmatprep.subr.mxu0 0.0
    %146 = vmatpush1.msra.mxu0 %v119
    %147 = vmatprep.subr.mxu0 0.0
    %148 = vmatpush1.msra.mxu0 0.0
    %149 = vmatprep.subr.mxu0 0.0
    %150 = vmatpush1.msra.mxu0 0.0
    %151 = vmatprep.subr.mxu0 0.0
    %152 = vmatpush1.msra.mxu0 0.0
    %153 = vmatprep.subr.mxu0 0.0
    %154 = vmatpush1.msra.mxu0 0.0
    %155 = vmatprep.subr.mxu0 0.0
    %156 = vmatpush1.msra.mxu0 0.0
    %157 = vmatprep.subr.mxu0 0.0
    %158 = vmatpush1.msra.mxu0 0.0
    %159 = vmatprep.subr.mxu0 0.0
    %160 = vmatpush1.msra.mxu0 0.0
    %161 = vmatprep.subr.mxu0 0.0
    %162 = vmatpush1.msra.mxu0 0.0
    %163 = vmatprep.subr.mxu0 0.0
    %164 = vmatpush1.msra.mxu0 0.0
    %165 = vmatprep.subr.mxu0 0.0
    %166 = vmatpush1.msra.mxu0 0.0
    %167 = vmatprep.subr.mxu0 0.0
    %168 = vmatpush1.msra.mxu0 0.0
    %169 = vmatprep.subr.mxu0 0.0
    %170 = vmatpush1.msra.mxu0 0.0
    %171 = vmatprep.subr.mxu0 0.0
    %172 = vmatpush1.msra.mxu0 0.0
    %173 = vmatprep.subr.mxu0 0.0
    %174 = vmatpush1.msra.mxu0 0.0
    %175 = vmatprep.subr.mxu0 0.0
    %176 = vmatpush1.msra.mxu0 0.0
    %177 = vmatprep.subr.mxu0 0.0
    %178 = vmatpush1.msra.mxu0 0.0
    %179 = vmatprep.subr.mxu0 0.0
    %180 = vmatpush1.msra.mxu0 0.0
    %181 = vmatprep.subr.mxu0 0.0
    %182 = vmatpush1.msra.mxu0 0.0
    %183 = vmatprep.subr.mxu0 0.0
    %184 = vmatpush1.msra.mxu0 0.0
    %185 = vmatprep.subr.mxu0 0.0
    %186 = vmatpush1.msra.mxu0 0.0
    %187 = vmatprep.subr.mxu0 0.0
    %188 = vmatpush1.msra.mxu0 0.0
    %189 = vmatprep.subr.mxu0 0.0
    %190 = vmatpush1.msra.mxu0 0.0
    %191 = vmatprep.subr.mxu0 0.0
    %192 = vmatpush1.msra.mxu0 0.0
    %193 = vmatprep.subr.mxu0 0.0
    %194 = vmatpush1.msra.mxu0 0.0
    %195 = vmatprep.mubr.f32.mxu0 0.0
    %196 = vmatmul.mubr.f32.gmra.mrb[0].mxu0 %v129
    %v197 = vpop.f32.mrb[0].mxu0
    %v198 = vadd.f32 %v125, %v197
    %v199 = vpop.f32.mrb[0].mxu0
    %200 = vdwg.mxu0
    %v201 = vmax.f32 %v198, 0.0
    %v202 = vld [vmem:[%s4] sm:$0xff]
    %v203 = vld [vmem:[%s4 + $0x8] sm:$0xff]
    %v204 = vld [vmem:[%s4 + $0x10] sm:$0xff]
    %v205 = vld [vmem:[%s4 + $0x18] sm:$0xff]
    %v206 = vld [vmem:[%s5] sm:$0x1]
    %v208 = vlaneseq
    %v209 = vshrl.u32 %v208, 7
    %v210 = vsub.s32 0, %v209
    %v211 = vrot.slane %v206, %v210
    %vm213 = vcmask 261120
    %v215 = vsel %vm213, %v201, 0
    %217 = vmatprep.subr.mxu0 0.0
    %218 = vmatpush1.msra.mxu0 %v202
    %219 = vmatprep.subr.mxu0 0.0
    %220 = vmatpush1.msra.mxu0 %v203
    %221 = vmatprep.subr.mxu0 0.0
    %222 = vmatpush1.msra.mxu0 %v204
    %223 = vmatprep.subr.mxu0 0.0
    %224 = vmatpush1.msra.mxu0 %v205
    %225 = vmatprep.subr.mxu0 0.0
    %226 = vmatpush1.msra.mxu0 0.0
    %227 = vmatprep.subr.mxu0 0.0
    %228 = vmatpush1.msra.mxu0 0.0
    %229 = vmatprep.subr.mxu0 0.0
    %230 = vmatpush1.msra.mxu0 0.0
    %231 = vmatprep.subr.mxu0 0.0
    %232 = vmatpush1.msra.mxu0 0.0
    %233 = vmatprep.subr.mxu0 0.0
    %234 = vmatpush1.msra.mxu0 0.0
    %235 = vmatprep.subr.mxu0 0.0
    %236 = vmatpush1.msra.mxu0 0.0
    %237 = vmatprep.subr.mxu0 0.0
    %238 = vmatpush1.msra.mxu0 0.0
    %239 = vmatprep.subr.mxu0 0.0
    %240 = vmatpush1.msra.mxu0 0.0
    %241 = vmatprep.subr.mxu0 0.0
    %242 = vmatpush1.msra.mxu0 0.0
    %243 = vmatprep.subr.mxu0 0.0
    %244 = vmatpush1.msra.mxu0 0.0
    %245 = vmatprep.subr.mxu0 0.0
    %246 = vmatpush1.msra.mxu0 0.0
    %247 = vmatprep.subr.mxu0 0.0
    %248 = vmatpush1.msra.mxu0 0.0
    %249 = vmatprep.subr.mxu0 0.0
    %250 = vmatpush1.msra.mxu0 0.0
    %251 = vmatprep.subr.mxu0 0.0
    %252 = vmatpush1.msra.mxu0 0.0
    %253 = vmatprep.subr.mxu0 0.0
    %254 = vmatpush1.msra.mxu0 0.0
    %255 = vmatprep.subr.mxu0 0.0
    %256 = vmatpush1.msra.mxu0 0.0
    %257 = vmatprep.subr.mxu0 0.0
    %258 = vmatpush1.msra.mxu0 0.0
    %259 = vmatprep.subr.mxu0 0.0
    %260 = vmatpush1.msra.mxu0 0.0
    %261 = vmatprep.subr.mxu0 0.0
    %262 = vmatpush1.msra.mxu0 0.0
    %263 = vmatprep.subr.mxu0 0.0
    %264 = vmatpush1.msra.mxu0 0.0
    %265 = vmatprep.subr.mxu0 0.0
    %266 = vmatpush1.msra.mxu0 0.0
    %267 = vmatprep.subr.mxu0 0.0
    %268 = vmatpush1.msra.mxu0 0.0
    %269 = vmatprep.subr.mxu0 0.0
    %270 = vmatpush1.msra.mxu0 0.0
    %271 = vmatprep.subr.mxu0 0.0
    %272 = vmatpush1.msra.mxu0 0.0
    %273 = vmatprep.subr.mxu0 0.0
    %274 = vmatpush1.msra.mxu0 0.0
    %275 = vmatprep.subr.mxu0 0.0
    %276 = vmatpush1.msra.mxu0 0.0
    %277 = vmatprep.subr.mxu0 0.0
    %278 = vmatpush1.msra.mxu0 0.0
    %279 = vmatprep.subr.mxu0 0.0
    %280 = vmatpush1.msra.mxu0 0.0
    %281 = vmatprep.mubr.f32.mxu0 0.0
    %282 = vmatmul.mubr.f32.gmra.mrb[0].mxu0 %v215
    %v283 = vpop.f32.mrb[0].mxu0
    %v284 = vadd.f32 %v211, %v283
    %v285 = vpop.f32.mrb[0].mxu0
    %286 = vdwg.mxu0
    %v287 = vmul.f32 %v284, 0.5
    %v288 = vmul.f32 %v287, 1.442695
    %v289 = vpow.pop %v288
    %v290 = vld [vmem:[%s1] sm:$0xff]
    %v291 = vld [vmem:[%s6] sm:$0xff]
    %v292 = vld [vmem:[%s6 + $0x8] sm:$0xff]
    %v293 = vld [vmem:[#allocation2] sm:$0x1]
    %v295 = vlaneseq
    %v296 = vshrl.u32 %v295, 7
    %v297 = vsub.s32 0, %v296
    %v298 = vrot.slane %v293, %v297
    %vm300 = vcmask 130048
    %v302 = vsel %vm300, %v290, 0
    %304 = vmatprep.subr.mxu0 0.0
    %305 = vmatpush1.msra.mxu0 %v291
    %306 = vmatprep.subr.mxu0 0.0
    %307 = vmatpush1.msra.mxu0 %v292
    %308 = vmatprep.subr.mxu0 0.0
    %309 = vmatpush1.msra.mxu0 0.0
    %310 = vmatprep.subr.mxu0 0.0
    %311 = vmatpush1.msra.mxu0 0.0
    %312 = vmatprep.subr.mxu0 0.0
    %313 = vmatpush1.msra.mxu0 0.0
    %314 = vmatprep.subr.mxu0 0.0
    %315 = vmatpush1.msra.mxu0 0.0
    %316 = vmatprep.subr.mxu0 0.0
    %317 = vmatpush1.msra.mxu0 0.0
    %318 = vmatprep.subr.mxu0 0.0
    %319 = vmatpush1.msra.mxu0 0.0
    %320 = vmatprep.subr.mxu0 0.0
    %321 = vmatpush1.msra.mxu0 0.0
    %322 = vmatprep.subr.mxu0 0.0
    %323 = vmatpush1.msra.mxu0 0.0
    %324 = vmatprep.subr.mxu0 0.0
    %325 = vmatpush1.msra.mxu0 0.0
    %326 = vmatprep.subr.mxu0 0.0
    %327 = vmatpush1.msra.mxu0 0.0
    %328 = vmatprep.subr.mxu0 0.0
    %329 = vmatpush1.msra.mxu0 0.0
    %330 = vmatprep.subr.mxu0 0.0
    %331 = vmatpush1.msra.mxu0 0.0
    %332 = vmatprep.subr.mxu0 0.0
    %333 = vmatpush1.msra.mxu0 0.0
    %334 = vmatprep.subr.mxu0 0.0
    %335 = vmatpush1.msra.mxu0 0.0
    %336 = vmatprep.subr.mxu0 0.0
    %337 = vmatpush1.msra.mxu0 0.0
    %338 = vmatprep.subr.mxu0 0.0
    %339 = vmatpush1.msra.mxu0 0.0
    %340 = vmatprep.subr.mxu0 0.0
    %341 = vmatpush1.msra.mxu0 0.0
    %342 = vmatprep.subr.mxu0 0.0
    %343 = vmatpush1.msra.mxu0 0.0
    %344 = vmatprep.subr.mxu0 0.0
    %345 = vmatpush1.msra.mxu0 0.0
    %346 = vmatprep.subr.mxu0 0.0
    %347 = vmatpush1.msra.mxu0 0.0
    %348 = vmatprep.subr.mxu0 0.0
    %349 = vmatpush1.msra.mxu0 0.0
    %350 = vmatprep.subr.mxu0 0.0
    %351 = vmatpush1.msra.mxu0 0.0
    %352 = vmatprep.subr.mxu0 0.0
    %353 = vmatpush1.msra.mxu0 0.0
    %354 = vmatprep.subr.mxu0 0.0
    %355 = vmatpush1.msra.mxu0 0.0
    %356 = vmatprep.subr.mxu0 0.0
    %357 = vmatpush1.msra.mxu0 0.0
    %358 = vmatprep.subr.mxu0 0.0
    %359 = vmatpush1.msra.mxu0 0.0
    %360 = vmatprep.subr.mxu0 0.0
    %361 = vmatpush1.msra.mxu0 0.0
    %362 = vmatprep.subr.mxu0 0.0
    %363 = vmatpush1.msra.mxu0 0.0
    %364 = vmatprep.subr.mxu0 0.0
    %365 = vmatpush1.msra.mxu0 0.0
    %366 = vmatprep.subr.mxu0 0.0
    %367 = vmatpush1.msra.mxu0 0.0
    %368 = vmatprep.mubr.f32.mxu0 0.0
    %369 = vmatmul.mubr.f32.gmra.mrb[0].mxu0 %v302
    %v370 = vpop.f32.mrb[0].mxu0
    %v371 = vadd.f32 %v298, %v370
    %v372 = vpop.f32.mrb[0].mxu0
    %373 = vdwg.mxu0
    %v374 = vmax.f32 %v371, 0.0
    %v375 = vld [vmem:[%s8] sm:$0xff]
    %v376 = vld [vmem:[%s8 + $0x8] sm:$0xff]
    %v377 = vld [vmem:[%s8 + $0x10] sm:$0xff]
    %v378 = vld [vmem:[%s8 + $0x18] sm:$0xff]
    %v379 = vld [vmem:[#allocation4] sm:$0x1]
    %v381 = vlaneseq
    %v382 = vshrl.u32 %v381, 7
    %v383 = vsub.s32 0, %v382
    %v384 = vrot.slane %v379, %v383
    %v387 = vsel %vm213, %v374, 0
    %389 = vmatprep.subr.mxu0 0.0
    %390 = vmatpush1.msra.mxu0 %v375
    %391 = vmatprep.subr.mxu0 0.0
    %392 = vmatpush1.msra.mxu0 %v376
    %393 = vmatprep.subr.mxu0 0.0
    %394 = vmatpush1.msra.mxu0 %v377
    %395 = vmatprep.subr.mxu0 0.0
    %396 = vmatpush1.msra.mxu0 %v378
    %397 = vmatprep.subr.mxu0 0.0
    %398 = vmatpush1.msra.mxu0 0.0
    %399 = vmatprep.subr.mxu0 0.0
    %400 = vmatpush1.msra.mxu0 0.0
    %401 = vmatprep.subr.mxu0 0.0
    %402 = vmatpush1.msra.mxu0 0.0
    %403 = vmatprep.subr.mxu0 0.0
    %404 = vmatpush1.msra.mxu0 0.0
    %405 = vmatprep.subr.mxu0 0.0
    %406 = vmatpush1.msra.mxu0 0.0
    %407 = vmatprep.subr.mxu0 0.0
    %408 = vmatpush1.msra.mxu0 0.0
    %409 = vmatprep.subr.mxu0 0.0
    %410 = vmatpush1.msra.mxu0 0.0
    %411 = vmatprep.subr.mxu0 0.0
    %412 = vmatpush1.msra.mxu0 0.0
    %413 = vmatprep.subr.mxu0 0.0
    %414 = vmatpush1.msra.mxu0 0.0
    %415 = vmatprep.subr.mxu0 0.0
    %416 = vmatpush1.msra.mxu0 0.0
    %417 = vmatprep.subr.mxu0 0.0
    %418 = vmatpush1.msra.mxu0 0.0
    %419 = vmatprep.subr.mxu0 0.0
    %420 = vmatpush1.msra.mxu0 0.0
    %421 = vmatprep.subr.mxu0 0.0
    %422 = vmatpush1.msra.mxu0 0.0
    %423 = vmatprep.subr.mxu0 0.0
    %424 = vmatpush1.msra.mxu0 0.0
    %425 = vmatprep.subr.mxu0 0.0
    %426 = vmatpush1.msra.mxu0 0.0
    %427 = vmatprep.subr.mxu0 0.0
    %428 = vmatpush1.msra.mxu0 0.0
    %429 = vmatprep.subr.mxu0 0.0
    %430 = vmatpush1.msra.mxu0 0.0
    %431 = vmatprep.subr.mxu0 0.0
    %432 = vmatpush1.msra.mxu0 0.0
    %433 = vmatprep.subr.mxu0 0.0
    %434 = vmatpush1.msra.mxu0 0.0
    %435 = vmatprep.subr.mxu0 0.0
    %436 = vmatpush1.msra.mxu0 0.0
    %437 = vmatprep.subr.mxu0 0.0
    %438 = vmatpush1.msra.mxu0 0.0
    %439 = vmatprep.subr.mxu0 0.0
    %440 = vmatpush1.msra.mxu0 0.0
    %441 = vmatprep.subr.mxu0 0.0
    %442 = vmatpush1.msra.mxu0 0.0
    %443 = vmatprep.subr.mxu0 0.0
    %444 = vmatpush1.msra.mxu0 0.0
    %445 = vmatprep.subr.mxu0 0.0
    %446 = vmatpush1.msra.mxu0 0.0
    %447 = vmatprep.subr.mxu0 0.0
    %448 = vmatpush1.msra.mxu0 0.0
    %449 = vmatprep.subr.mxu0 0.0
    %450 = vmatpush1.msra.mxu0 0.0
    %451 = vmatprep.subr.mxu0 0.0
    %452 = vmatpush1.msra.mxu0 0.0
    %453 = vmatprep.mubr.f32.mxu0 0.0
    %454 = vmatmul.mubr.f32.gmra.mrb[0].mxu0 %v387
    %v455 = vpop.f32.mrb[0].mxu0
    %v456 = vadd.f32 %v384, %v455
    %v457 = vpop.f32.mrb[0].mxu0
    %458 = vdwg.mxu0
    %v459 = vmul.f32 %v456, 0.5
    %v460 = vmul.f32 %v459, 1.442695
    %v461 = vpow.pop %v460
    %v462 = vmul.f32 %v289, %v289
    %v463 = vadd.f32 %v462, 1e-08
    %v464 = vrcp.pop %v463
    %v465 = vmul.f32 1.0, %v464
    %v466 = vmul.f32 %v461, %v461
    %v467 = vadd.f32 %v466, 1e-08
    %v468 = vrcp.pop %v467
    %v469 = vmul.f32 1.0, %v468
    %v470 = vadd.f32 %v465, 1.0
    %v471 = vadd.f32 %v470, %v469
    %v472 = vrcp.pop %v471
    %v473 = vmul.f32 1.0, %v472
    %475 = vrot.lane.b32.xlu0 %v465, 112
    %v476 = vpop.permute.xlu0 %475
    %v478 = vmul.f32 %v284, %v476
    %v479 = vadd.f32 %v478, 0.0
    %481 = vrot.lane.b32.xlu0 %v469, 112
    %v482 = vpop.permute.xlu0 %481
    %v484 = vmul.f32 %v456, %v482
    %v485 = vadd.f32 %v479, %v484
    %487 = vrot.lane.b32.xlu0 %v473, 112
    %v488 = vpop.permute.xlu0 %487
    %v490 = vmul.f32 %v485, %v488
    %v491 = vrsqrt.pop %v473
    %v492 = vmul.f32 %v473, %v491
    %vm493 = vcmp.eq.f32.partialorder %v473, inf
    %v494 = vsel %vm493, %v473, %v492
    %vm495 = vcmp.eq.f32.partialorder %v473, 0.0
    %v496 = vand.u32 %v473, 2147483648
    %v497 = vsel %vm495, %v496, %v494
    %v498 = vld [vmem:[%s10] sm:$0xff]
    %v499 = vld [vmem:[%s10 + $0x8] sm:$0xff]
    %v500 = vld [vmem:[#allocation6] sm:$0x1]
    %v502 = vlaneseq
    %v503 = vshrl.u32 %v502, 7
    %v504 = vsub.s32 0, %v503
    %v505 = vrot.slane %v500, %v504
    %v508 = vsel %vm300, %v490, 0
    %510 = vmatprep.subr.mxu0 0.0
    %511 = vmatpush1.msra.mxu0 %v498
    %512 = vmatprep.subr.mxu0 0.0
    %513 = vmatpush1.msra.mxu0 %v499
    %514 = vmatprep.subr.mxu0 0.0
    %515 = vmatpush1.msra.mxu0 0.0
    %516 = vmatprep.subr.mxu0 0.0
    %517 = vmatpush1.msra.mxu0 0.0
    %518 = vmatprep.subr.mxu0 0.0
    %519 = vmatpush1.msra.mxu0 0.0
    %520 = vmatprep.subr.mxu0 0.0
    %521 = vmatpush1.msra.mxu0 0.0
    %522 = vmatprep.subr.mxu0 0.0
    %523 = vmatpush1.msra.mxu0 0.0
    %524 = vmatprep.subr.mxu0 0.0
    %525 = vmatpush1.msra.mxu0 0.0
    %526 = vmatprep.subr.mxu0 0.0
    %527 = vmatpush1.msra.mxu0 0.0
    %528 = vmatprep.subr.mxu0 0.0
    %529 = vmatpush1.msra.mxu0 0.0
    %530 = vmatprep.subr.mxu0 0.0
    %531 = vmatpush1.msra.mxu0 0.0
    %532 = vmatprep.subr.mxu0 0.0
    %533 = vmatpush1.msra.mxu0 0.0
    %534 = vmatprep.subr.mxu0 0.0
    %535 = vmatpush1.msra.mxu0 0.0
    %536 = vmatprep.subr.mxu0 0.0
    %537 = vmatpush1.msra.mxu0 0.0
    %538 = vmatprep.subr.mxu0 0.0
    %539 = vmatpush1.msra.mxu0 0.0
    %540 = vmatprep.subr.mxu0 0.0
    %541 = vmatpush1.msra.mxu0 0.0
    %542 = vmatprep.subr.mxu0 0.0
    %543 = vmatpush1.msra.mxu0 0.0
    %544 = vmatprep.subr.mxu0 0.0
    %545 = vmatpush1.msra.mxu0 0.0
    %546 = vmatprep.subr.mxu0 0.0
    %547 = vmatpush1.msra.mxu0 0.0
    %548 = vmatprep.subr.mxu0 0.0
    %549 = vmatpush1.msra.mxu0 0.0
    %550 = vmatprep.subr.mxu0 0.0
    %551 = vmatpush1.msra.mxu0 0.0
    %552 = vmatprep.subr.mxu0 0.0
    %553 = vmatpush1.msra.mxu0 0.0
    %554 = vmatprep.subr.mxu0 0.0
    %555 = vmatpush1.msra.mxu0 0.0
    %556 = vmatprep.subr.mxu0 0.0
    %557 = vmatpush1.msra.mxu0 0.0
    %558 = vmatprep.subr.mxu0 0.0
    %559 = vmatpush1.msra.mxu0 0.0
    %560 = vmatprep.subr.mxu0 0.0
    %561 = vmatpush1.msra.mxu0 0.0
    %562 = vmatprep.subr.mxu0 0.0
    %563 = vmatpush1.msra.mxu0 0.0
    %564 = vmatprep.subr.mxu0 0.0
    %565 = vmatpush1.msra.mxu0 0.0
    %566 = vmatprep.subr.mxu0 0.0
    %567 = vmatpush1.msra.mxu0 0.0
    %568 = vmatprep.subr.mxu0 0.0
    %569 = vmatpush1.msra.mxu0 0.0
    %570 = vmatprep.subr.mxu0 0.0
    %571 = vmatpush1.msra.mxu0 0.0
    %572 = vmatprep.subr.mxu0 0.0
    %573 = vmatpush1.msra.mxu0 0.0
    %574 = vmatprep.mubr.f32.mxu0 0.0
    %575 = vmatmul.mubr.f32.gmra.mrb[0].mxu0 %v508
    %v576 = vpop.f32.mrb[0].mxu0
    %v577 = vadd.f32 %v505, %v576
    %v578 = vpop.f32.mrb[0].mxu0
    %579 = vdwg.mxu0
    %v580 = vmax.f32 %v577, 0.0
    %v581 = vld [vmem:[%s12] sm:$0xff]
    %v582 = vld [vmem:[%s12 + $0x8] sm:$0xff]
    %v583 = vld [vmem:[%s12 + $0x10] sm:$0xff]
    %v584 = vld [vmem:[%s12 + $0x18] sm:$0xff]
    %v585 = vld [vmem:[#allocation7] sm:$0x1]
    %v587 = vlaneseq
    %v588 = vshrl.u32 %v587, 7
    %v589 = vsub.s32 0, %v588
    %v590 = vrot.slane %v585, %v589
    %v593 = vsel %vm213, %v580, 0
    %595 = vmatprep.subr.mxu0 0.0
    %596 = vmatpush1.msra.mxu0 %v581
    %597 = vmatprep.subr.mxu0 0.0
    %598 = vmatpush1.msra.mxu0 %v582
    %599 = vmatprep.subr.mxu0 0.0
    %600 = vmatpush1.msra.mxu0 %v583
    %601 = vmatprep.subr.mxu0 0.0
    %602 = vmatpush1.msra.mxu0 %v584
    %603 = vmatprep.subr.mxu0 0.0
    %604 = vmatpush1.msra.mxu0 0.0
    %605 = vmatprep.subr.mxu0 0.0
    %606 = vmatpush1.msra.mxu0 0.0
    %607 = vmatprep.subr.mxu0 0.0
    %608 = vmatpush1.msra.mxu0 0.0
    %609 = vmatprep.subr.mxu0 0.0
    %610 = vmatpush1.msra.mxu0 0.0
    %611 = vmatprep.subr.mxu0 0.0
    %612 = vmatpush1.msra.mxu0 0.0
    %613 = vmatprep.subr.mxu0 0.0
    %614 = vmatpush1.msra.mxu0 0.0
    %615 = vmatprep.subr.mxu0 0.0
    %616 = vmatpush1.msra.mxu0 0.0
    %617 = vmatprep.subr.mxu0 0.0
    %618 = vmatpush1.msra.mxu0 0.0
    %619 = vmatprep.subr.mxu0 0.0
    %620 = vmatpush1.msra.mxu0 0.0
    %621 = vmatprep.subr.mxu0 0.0
    %622 = vmatpush1.msra.mxu0 0.0
    %623 = vmatprep.subr.mxu0 0.0
    %624 = vmatpush1.msra.mxu0 0.0
    %625 = vmatprep.subr.mxu0 0.0
    %626 = vmatpush1.msra.mxu0 0.0
    %627 = vmatprep.subr.mxu0 0.0
    %628 = vmatpush1.msra.mxu0 0.0
    %629 = vmatprep.subr.mxu0 0.0
    %630 = vmatpush1.msra.mxu0 0.0
    %631 = vmatprep.subr.mxu0 0.0
    %632 = vmatpush1.msra.mxu0 0.0
    %633 = vmatprep.subr.mxu0 0.0
    %634 = vmatpush1.msra.mxu0 0.0
    %635 = vmatprep.subr.mxu0 0.0
    %636 = vmatpush1.msra.mxu0 0.0
    %637 = vmatprep.subr.mxu0 0.0
    %638 = vmatpush1.msra.mxu0 0.0
    %639 = vmatprep.subr.mxu0 0.0
    %640 = vmatpush1.msra.mxu0 0.0
    %641 = vmatprep.subr.mxu0 0.0
    %642 = vmatpush1.msra.mxu0 0.0
    %643 = vmatprep.subr.mxu0 0.0
    %644 = vmatpush1.msra.mxu0 0.0
    %645 = vmatprep.subr.mxu0 0.0
    %646 = vmatpush1.msra.mxu0 0.0
    %647 = vmatprep.subr.mxu0 0.0
    %648 = vmatpush1.msra.mxu0 0.0
    %649 = vmatprep.subr.mxu0 0.0
    %650 = vmatpush1.msra.mxu0 0.0
    %651 = vmatprep.subr.mxu0 0.0
    %652 = vmatpush1.msra.mxu0 0.0
    %653 = vmatprep.subr.mxu0 0.0
    %654 = vmatpush1.msra.mxu0 0.0
    %655 = vmatprep.subr.mxu0 0.0
    %656 = vmatpush1.msra.mxu0 0.0
    %657 = vmatprep.subr.mxu0 0.0
    %658 = vmatpush1.msra.mxu0 0.0
    %659 = vmatprep.mubr.f32.mxu0 0.0
    %660 = vmatmul.mubr.f32.gmra.mrb[0].mxu0 %v593
    %v661 = vpop.f32.mrb[0].mxu0
    %v662 = vadd.f32 %v590, %v661
    %v663 = vpop.f32.mrb[0].mxu0
    %664 = vdwg.mxu0
    %v665 = vxor.u32 %v662, 2147483648
    %v666 = vmul.f32 %v665, 1.442695
    %v667 = vpow.pop %v666
    %v668 = vadd.f32 %v667, 1.0
    %v669 = vrcp.pop %v668
    %v670 = vmul.f32 1.0, %v669
    %v671 = vld [vmem:[%s14] sm:$0xff]
    %v672 = vld [vmem:[%s14 + $0x8] sm:$0xff]
    %v673 = vld [vmem:[%s14 + $0x10] sm:$0xff]
    %v674 = vld [vmem:[%s14 + $0x18] sm:$0xff]
    %v675 = vld [vmem:[#allocation9] sm:$0x1]
    %v677 = vlaneseq
    %v678 = vshrl.u32 %v677, 7
    %v679 = vsub.s32 0, %v678
    %v680 = vrot.slane %v675, %v679
    %682 = vrot.lane.b32.xlu0 %v580, 96
    %v683 = vpop.permute.xlu0 %682
    %v684 = vsel %vm213, %v683, 0
    %686 = vmatprep.subr.mxu0 0.0
    %687 = vmatpush1.msra.mxu0 %v671
    %688 = vmatprep.subr.mxu0 0.0
    %689 = vmatpush1.msra.mxu0 %v672
    %690 = vmatprep.subr.mxu0 0.0
    %691 = vmatpush1.msra.mxu0 %v673
    %692 = vmatprep.subr.mxu0 0.0
    %693 = vmatpush1.msra.mxu0 %v674
    %694 = vmatprep.subr.mxu0 0.0
    %695 = vmatpush1.msra.mxu0 0.0
    %696 = vmatprep.subr.mxu0 0.0
    %697 = vmatpush1.msra.mxu0 0.0
    %698 = vmatprep.subr.mxu0 0.0
    %699 = vmatpush1.msra.mxu0 0.0
    %700 = vmatprep.subr.mxu0 0.0
    %701 = vmatpush1.msra.mxu0 0.0
    %702 = vmatprep.subr.mxu0 0.0
    %703 = vmatpush1.msra.mxu0 0.0
    %704 = vmatprep.subr.mxu0 0.0
    %705 = vmatpush1.msra.mxu0 0.0
    %706 = vmatprep.subr.mxu0 0.0
    %707 = vmatpush1.msra.mxu0 0.0
    %708 = vmatprep.subr.mxu0 0.0
    %709 = vmatpush1.msra.mxu0 0.0
    %710 = vmatprep.subr.mxu0 0.0
    %711 = vmatpush1.msra.mxu0 0.0
    %712 = vmatprep.subr.mxu0 0.0
    %713 = vmatpush1.msra.mxu0 0.0
    %714 = vmatprep.subr.mxu0 0.0
    %715 = vmatpush1.msra.mxu0 0.0
    %716 = vmatprep.subr.mxu0 0.0
    %717 = vmatpush1.msra.mxu0 0.0
    %718 = vmatprep.subr.mxu0 0.0
    %719 = vmatpush1.msra.mxu0 0.0
    %720 = vmatprep.subr.mxu0 0.0
    %721 = vmatpush1.msra.mxu0 0.0
    %722 = vmatprep.subr.mxu0 0.0
    %723 = vmatpush1.msra.mxu0 0.0
    %724 = vmatprep.subr.mxu0 0.0
    %725 = vmatpush1.msra.mxu0 0.0
    %726 = vmatprep.subr.mxu0 0.0
    %727 = vmatpush1.msra.mxu0 0.0
    %728 = vmatprep.subr.mxu0 0.0
    %729 = vmatpush1.msra.mxu0 0.0
    %730 = vmatprep.subr.mxu0 0.0
    %731 = vmatpush1.msra.mxu0 0.0
    %732 = vmatprep.subr.mxu0 0.0
    %733 = vmatpush1.msra.mxu0 0.0
    %734 = vmatprep.subr.mxu0 0.0
    %735 = vmatpush1.msra.mxu0 0.0
    %736 = vmatprep.subr.mxu0 0.0
    %737 = vmatpush1.msra.mxu0 0.0
    %738 = vmatprep.subr.mxu0 0.0
    %739 = vmatpush1.msra.mxu0 0.0
    %740 = vmatprep.subr.mxu0 0.0
    %741 = vmatpush1.msra.mxu0 0.0
    %742 = vmatprep.subr.mxu0 0.0
    %743 = vmatpush1.msra.mxu0 0.0
    %744 = vmatprep.subr.mxu0 0.0
    %745 = vmatpush1.msra.mxu0 0.0
    %746 = vmatprep.subr.mxu0 0.0
    %747 = vmatpush1.msra.mxu0 0.0
    %748 = vmatprep.subr.mxu0 0.0
    %749 = vmatpush1.msra.mxu0 0.0
    %750 = vmatprep.mubr.f32.mxu0 0.0
    %751 = vmatmul.mubr.f32.gmra.mrb[0].mxu0 %v684
    %v752 = vpop.f32.mrb[0].mxu0
    %v753 = vadd.f32 %v680, %v752
    %v754 = vpop.f32.mrb[0].mxu0
    %755 = vdwg.mxu0
    %v756 = vmul.f32 %v753, 0.5
    %v757 = vmul.f32 %v756, 1.442695
    %v758 = vpow.pop %v757
    %760 = vrot.lane.b32.xlu0 %v670, 64
    %v761 = vpop.permute.xlu0 %760
    %763 = vrot.lane.b32.xlu0 %v490, 32
    %v764 = vpop.permute.xlu0 %763
    %767 = vrot.lane.b32.xlu0 %v497, 32
    %v768 = vpop.permute.xlu0 %767
    %v770 = vsel %vm127, %v662, %v761
    %v771 = vsel %vm300, %v753, %v758
    %v772 = vsel %vm213, %v771, %v764
    %vm773 = vcmask 392192
    %v774 = vsel %vm773, %v772, %v768
    %v775 = vsel %vm127, %v774, 0.0
    %776 = vst [vmem:[%s16] sm:$0xff] %v770
    %777 = vst [vmem:[%s16 + $0x8] sm:$0xff] %v775
    // Predicated region
    $region86: #{mvae_forward.1} parent=1 // pred_check
      _
    $region87: #{mvae_forward.1} parent=1 // pred_check_branch
      %779 = sbr.rel (0) target = $region89
    $region88: #{mvae_forward.1} parent=1 // pred_region
      _
    $region89: #{mvae_forward.1} parent=1 // pred_fallthru
      _
    // Predicated region
    $region90: #{mvae_forward.1} parent=1 // pred_check
      _
    $region91: #{mvae_forward.1} parent=1 // pred_check_branch
      %781 = sbr.rel (0) target = $region93
    $region92: #{mvae_forward.1} parent=1 // pred_region
      _
    $region93: #{mvae_forward.1} parent=1 // pred_fallthru
      _
    %782 = vsyncpa [#allocation3], 1
    %783 = vsyncpa [#allocation5], 1
    %784 = vsyncpa [#allocation8], 1

</llo_original>
